<compile_context>
chip_gen: v5e
topology: v5e:2x2
jax: 0.10.0
libtpu: 0.0.40
codegen_flags: <defaults>
</compile_context>

<pallas_src>
import functools

import jax
import jax.numpy as jnp
from jax.experimental import pallas as pl
from jax.experimental.pallas import tpu as pltpu

EPS = 1e-5


# --------------------------- sizing heuristics ------------------------------


def _vmem_budget():
    """(vmem_limit_bytes, target_block_bytes) per TPU generation."""
    try:
        info = pltpu.get_tpu_info()
        vmem = getattr(info, "vmem_capacity_bytes", 64 * 1024 * 1024)
    except Exception:
        vmem = 64 * 1024 * 1024
    if vmem >= 96 * 1024 * 1024:                  # v5e / v6e: 128 MiB VMEM
        return 96 * 1024 * 1024, 12 * 1024 * 1024
    return 48 * 1024 * 1024, 6 * 1024 * 1024      # v7x: 64 MiB VMEM


def _sublane_step(dtype):
    """Channel-block granularity: full sublane groups at the native dtype
    (f32 -> 8, bf16 -> 16, int8/fp8 -> 32)."""
    itemsize = jnp.dtype(dtype).itemsize
    return 8 * max(1, 4 // itemsize)


def _pick_c_blk(c, hw, itemsize, step, must_divide=(), target_bytes=4 << 20):
    """Largest channel block that is a multiple of `step`, divides `c` (and
    every entry of `must_divide`) and keeps a (c_blk, HW) native-dtype block
    under `target_bytes`.  Full-extent fallback when c is not step-aligned."""
    if c % step != 0:
        return c
    best = step
    for cb in range(step, c + 1, step):
        if c % cb:
            continue
        if any(d % cb for d in must_divide):
            continue
        if cb * hw * itemsize <= target_bytes:
            best = cb
    return best


def _pick_stats_blk(c, hw, half, itemsize, step, target_bytes):
    """Channel block for the BN-stats sweep: minimize IN channels leaked into
    the sweep (BN window start rounded down), then maximize the block size."""
    if c % step != 0:
        return c
    best_key, best_cb = None, step
    for cb in range(step, c + 1, step):
        if c % cb:
            continue
        if cb * hw * itemsize > target_bytes:
            continue
        leak = half - (half // cb) * cb
        key = (leak, -cb)
        if best_key is None or key < best_key:
            best_key, best_cb = key, cb
    return best_cb


def _pick_hw_blk(hw, c_blk, itemsize, target_bytes):
    """Spatial block (multiple of 128 dividing HW) for the HW-tiled path."""
    if hw % 128 != 0:
        return hw
    best = 128
    for hb in range(128, hw + 1, 128):
        if hw % hb:
            continue
        if c_blk * hb * itemsize <= target_bytes:
            best = hb
    return best


# ------------------------------ default path --------------------------------


def _bn_stats_kernel(x_ref, sum_ref, ssq_ref, *, c_blk, c_start, half):
    """grid = (channel_blocks, N).  Per-channel-block sum / sum-of-squares of
    the BN half, accumulated across the batch axis (the revisit axis)."""
    n = pl.program_id(1)
    x = x_ref[0].astype(jnp.float32)                         # (c_blk, HW)
    if c_start < half:   # static: first block(s) leak IN rows -> zero them
        ch = (c_start + pl.program_id(0) * c_blk
              + jax.lax.broadcasted_iota(jnp.int32, (c_blk, 1), 0))
        x = jnp.where(ch >= half, x, jnp.float32(0.0))
    s = jnp.sum(x, axis=1, keepdims=True)                    # (c_blk, 1)
    ss = jnp.sum(x * x, axis=1, keepdims=True)

    @pl.when(n == 0)
    def _():
        sum_ref[...] = s
        ssq_ref[...] = ss

    @pl.when(n > 0)
    def _():
        sum_ref[...] += s
        ssq_ref[...] += ss


def _dubin_norm_kernel(a_ref, b_ref, x_ref, o_ref, scale_ref, shift_ref, *,
                       c_blk, half, hw, pure_blocks):
    """grid = (N, channel_blocks).  IN channels: per-(n, c) spatial stats in a
    single pass; BN channels: precomputed folded scale/shift.  Per-element path
    is always y = x * scale + shift."""
    c = pl.program_id(1)
    x = x_ref[0].astype(jnp.float32)                         # (c_blk, HW)
    a = a_ref[...]                                           # (c_blk, 1)
    b = b_ref[...]
    inv_hw = jnp.float32(1.0 / hw)
    # TODO(synk): switch to shifted sums if inputs can have large mean/std
    # ratio; E[x^2]-E[x]^2 (clamped) is fine for normalized activations.

    if pure_blocks:
        # c_blk divides `half`: a block is entirely IN or entirely BN, so the
        # reductions / rsqrt are skipped outright for BN blocks.
        @pl.when(c * c_blk < half)
        def _():
            s = jnp.sum(x, axis=1, keepdims=True)
            ss = jnp.sum(x * x, axis=1, keepdims=True)
            mu = s * inv_hw
            var = jnp.maximum(ss * inv_hw - mu * mu, 0.0)
            sc = a * jax.lax.rsqrt(var + jnp.float32(EPS))
            scale_ref[...] = sc
            shift_ref[...] = b - mu * sc

        @pl.when(c * c_blk >= half)
        def _():
            scale_ref[...] = a
            shift_ref[...] = b

        scale = scale_ref[...]
        shift = shift_ref[...]
    else:
        # block straddles the IN/BN boundary: per-row select.
        s = jnp.sum(x, axis=1, keepdims=True)
        ss = jnp.sum(x * x, axis=1, keepdims=True)
        mu = s * inv_hw
        var = jnp.maximum(ss * inv_hw - mu * mu, 0.0)
        inv = jax.lax.rsqrt(var + jnp.float32(EPS))
        ch = c * c_blk + jax.lax.broadcasted_iota(jnp.int32, (c_blk, 1), 0)
        is_in = ch < half
        scale = a * jnp.where(is_in, inv, jnp.float32(1.0))
        shift = b - jnp.where(is_in, mu, jnp.float32(0.0)) * scale

    o_ref[0] = (x * scale + shift).astype(o_ref.dtype)


# --------------------------- HW-tiled fallback -------------------------------


def _stats_nc_kernel(x_ref, sum_ref, ssq_ref):
    """grid = (N, channel_blocks, hw_blocks).  Per-(n, c) sum / sum-of-squares
    accumulated over spatial chunks (the revisit axis)."""
    h = pl.program_id(2)
    x = x_ref[0].astype(jnp.float32)                         # (c_blk, hw_blk)
    s = jnp.sum(x, axis=1, keepdims=True)                    # (c_blk, 1)
    ss = jnp.sum(x * x, axis=1, keepdims=True)

    @pl.when(h == 0)
    def _():
        sum_ref[0] = s
        ssq_ref[0] = ss

    @pl.when(h > 0)
    def _():
        sum_ref[0] += s
        ssq_ref[0] += ss


def _affine_kernel(a_ref, b_ref, x_ref, o_ref):
    """grid = (N, channel_blocks, hw_blocks).  Pure y = x * a + b."""
    x = x_ref[0].astype(jnp.float32)
    o_ref[0] = (x * a_ref[0] + b_ref[0]).astype(o_ref.dtype)


def _dubin_forward_hw_tiled(xf, in_w, in_b, bn_w, bn_b, *, half, c_blk, hw_blk,
                            vmem_limit):
    N, C, HW = xf.shape
    grid = (N, C // c_blk, HW // hw_blk)

    sums, ssqs = pl.pallas_call(
        _stats_nc_kernel,
        out_shape=(jax.ShapeDtypeStruct((N, C, 1), jnp.float32),
                   jax.ShapeDtypeStruct((N, C, 1), jnp.float32)),
        grid=grid,
        in_specs=[pl.BlockSpec((1, c_blk, hw_blk), lambda n, c, h: (n, c, h))],
        out_specs=(pl.BlockSpec((1, c_blk, 1), lambda n, c, h: (n, c, 0)),
                   pl.BlockSpec((1, c_blk, 1), lambda n, c, h: (n, c, 0))),
        compiler_params=pltpu.CompilerParams(
            dimension_semantics=("parallel", "parallel", "arbitrary"),
            vmem_limit_bytes=vmem_limit),
    )(xf)

    # tiny O(N*C) folding in plain XLA
    s = sums[..., 0]                                         # (N, C)
    ss = ssqs[..., 0]
    inv_hw = jnp.float32(1.0 / HW)
    mu_i = s[:, :half] * inv_hw
    var_i = jnp.maximum(ss[:, :half] * inv_hw - mu_i * mu_i, 0.0)
    sc_i = in_w[None, :].astype(jnp.float32) * jax.lax.rsqrt(var_i + EPS)
    sh_i = in_b[None, :].astype(jnp.float32) - mu_i * sc_i

    cnt_b = jnp.float32(N * HW)
    s_b = jnp.sum(s[:, half:], axis=0)
    ss_b = jnp.sum(ss[:, half:], axis=0)
    mu_b = s_b / cnt_b
    var_b = jnp.maximum(ss_b / cnt_b - mu_b * mu_b, 0.0)
    sc_b = bn_w.astype(jnp.float32) * jax.lax.rsqrt(var_b + EPS)
    sh_b = bn_b.astype(jnp.float32) - mu_b * sc_b
    sc_b = jnp.broadcast_to(sc_b[None, :], (N, C - half))
    sh_b = jnp.broadcast_to(sh_b[None, :], (N, C - half))

    a = jnp.concatenate([sc_i, sc_b], axis=1)[..., None]     # (N, C, 1)
    b = jnp.concatenate([sh_i, sh_b], axis=1)[..., None]

    return pl.pallas_call(
        _affine_kernel,
        out_shape=jax.ShapeDtypeStruct((N, C, HW), xf.dtype),
        grid=grid,
        in_specs=[pl.BlockSpec((1, c_blk, 1), lambda n, c, h: (n, c, 0)),
                  pl.BlockSpec((1, c_blk, 1), lambda n, c, h: (n, c, 0)),
                  pl.BlockSpec((1, c_blk, hw_blk), lambda n, c, h: (n, c, h))],
        out_specs=pl.BlockSpec((1, c_blk, hw_blk), lambda n, c, h: (n, c, h)),
        compiler_params=pltpu.CompilerParams(
            dimension_semantics=("parallel", "parallel", "parallel"),
            vmem_limit_bytes=vmem_limit),
    )(a, b, xf)


# --------------------------------- wrapper -----------------------------------


def dubin_forward(x, in_w, in_b, bn_w, bn_b, *, half, block_target_bytes=None):
    """x: (N, C, H, W); params are 1-D per-channel.  Train-mode DuBIN forward."""
    N, C, H, W = x.shape
    HW = H * W
    assert 0 < half < C, "this wrapper expects both an IN and a BN half"

    itemsize = jnp.dtype(x.dtype).itemsize
    step = _sublane_step(x.dtype)
    vmem_limit, target = _vmem_budget()
    if block_target_bytes is not None:
        target = block_target_bytes

    xf = x.reshape(N, C, HW)                  # free view for contiguous NCHW

    # ---- large-H*W fallback: even the minimum channel block is too big -----
    min_cb = step if C % step == 0 else C
    if min_cb * HW * itemsize > target and HW % 128 == 0:
        hw_blk = _pick_hw_blk(HW, min_cb, itemsize, target)
        out = _dubin_forward_hw_tiled(xf, in_w, in_b, bn_w, bn_b, half=half,
                                      c_blk=min_cb, hw_blk=hw_blk,
                                      vmem_limit=vmem_limit)
        return out.reshape(N, C, H, W)
    # TODO(synk): HW not a multiple of 128 with huge C*HW still yields an
    # oversized block below; pad/reshape the spatial axis before tiling then.

    # ------------- pass 1: batch statistics for the BN channels -------------
    c_blk_s = _pick_stats_blk(C, HW, half, itemsize, step, target)
    c_start = (half // c_blk_s) * c_blk_s     # BN window start, block-aligned
    stat_c = C - c_start
    c_base = c_start // c_blk_s

    sums, ssqs = pl.pallas_call(
        functools.partial(_bn_stats_kernel, c_blk=c_blk_s, c_start=c_start,
                          half=half),
        out_shape=(jax.ShapeDtypeStruct((stat_c, 1), jnp.float32),
                   jax.ShapeDtypeStruct((stat_c, 1), jnp.float32)),
        grid=(stat_c // c_blk_s, N),
        in_specs=[pl.BlockSpec((1, c_blk_s, HW),
                               lambda c, n: (n, c_base + c, 0))],
        out_specs=(pl.BlockSpec((c_blk_s, 1), lambda c, n: (c, 0)),
                   pl.BlockSpec((c_blk_s, 1), lambda c, n: (c, 0))),
        compiler_params=pltpu.CompilerParams(
            dimension_semantics=("parallel", "arbitrary"),
            vmem_limit_bytes=vmem_limit),
    )(xf)

    # tiny O(C) folding in plain XLA: BN batch stats + affine
    cnt = jnp.float32(N * HW)
    s_bn = sums[half - c_start:, 0]
    ss_bn = ssqs[half - c_start:, 0]
    mu_b = s_bn / cnt
    var_b = jnp.maximum(ss_bn / cnt - mu_b * mu_b, 0.0)
    bn_scale = bn_w.astype(jnp.float32) * jax.lax.rsqrt(var_b + EPS)
    bn_shift = bn_b.astype(jnp.float32) - mu_b * bn_scale

    # per-channel (a, b): IN channels carry (weight, bias); BN channels carry
    # the fully folded (scale, shift).
    a_full = jnp.concatenate([in_w.astype(jnp.float32), bn_scale]).reshape(C, 1)
    b_full = jnp.concatenate([in_b.astype(jnp.float32), bn_shift]).reshape(C, 1)

    # ------------------------- pass 2: normalize ----------------------------
    md = (half,) if half % step == 0 else ()
    c_blk = _pick_c_blk(C, HW, itemsize, step, must_divide=md,
                        target_bytes=target)
    pure_blocks = (half % c_blk == 0)

    out = pl.pallas_call(
        functools.partial(_dubin_norm_kernel, c_blk=c_blk, half=half, hw=HW,
                          pure_blocks=pure_blocks),
        out_shape=jax.ShapeDtypeStruct((N, C, HW), x.dtype),
        grid=(N, C // c_blk),
        in_specs=[
            pl.BlockSpec((c_blk, 1), lambda n, c: (c, 0)),        # a (blocked)
            pl.BlockSpec((c_blk, 1), lambda n, c: (c, 0)),        # b (blocked)
            pl.BlockSpec((1, c_blk, HW), lambda n, c: (n, c, 0)),
        ],
        out_specs=pl.BlockSpec((1, c_blk, HW), lambda n, c: (n, c, 0)),
        scratch_shapes=[pltpu.VMEM((c_blk, 1), jnp.float32),
                        pltpu.VMEM((c_blk, 1), jnp.float32)],
        compiler_params=pltpu.CompilerParams(
            dimension_semantics=("parallel", "parallel"),
            vmem_limit_bytes=vmem_limit),
    )(a_full, b_full, xf)

    return out.reshape(N, C, H, W)


def dubin_reference(x, in_w, in_b, bn_w, bn_b, *, half):
    """Pure-JAX reference matching PyTorch semantics (train mode)."""
    x_in = x[:, :half].astype(jnp.float32)
    x_bn = x[:, half:].astype(jnp.float32)

    mu_i = jnp.mean(x_in, axis=(2, 3), keepdims=True)
    var_i = jnp.mean(jnp.square(x_in - mu_i), axis=(2, 3), keepdims=True)
    y_in = (x_in - mu_i) / jnp.sqrt(var_i + EPS) * in_w[None, :, None, None] \
           + in_b[None, :, None, None]

    mu_b = jnp.mean(x_bn, axis=(0, 2, 3), keepdims=True)
    var_b = jnp.mean(jnp.square(x_bn - mu_b), axis=(0, 2, 3), keepdims=True)
    y_bn = (x_bn - mu_b) / jnp.sqrt(var_b + EPS) * bn_w[None, :, None, None] \
           + bn_b[None, :, None, None]

    return jnp.concatenate([y_in, y_bn], axis=1)


if __name__ == "__main__":
    key = jax.random.PRNGKey(0)

    # Case 1: DuBIN(planes=4, ratio=0.5) -> 2 IN channels, 2 BN channels.
    N, C, H, W = 2, 4, 16, 16
    half = int(C * 0.5)
    kx, kw1, kb1, kw2, kb2 = jax.random.split(key, 5)
    x = jax.random.normal(kx, (N, C, H, W), dtype=jnp.float32)
    in_w = 1.0 + 0.1 * jax.random.normal(kw1, (half,), dtype=jnp.float32)
    in_b = 0.1 * jax.random.normal(kb1, (half,), dtype=jnp.float32)
    bn_w = 1.0 + 0.1 * jax.random.normal(kw2, (C - half,), dtype=jnp.float32)
    bn_b = 0.1 * jax.random.normal(kb2, (C - half,), dtype=jnp.float32)

    out = jax.block_until_ready(
        dubin_forward(x, in_w, in_b, bn_w, bn_b, half=half))
    ref = dubin_reference(x, in_w, in_b, bn_w, bn_b, half=half)
    assert out.shape == (N, C, H, W)
    assert jnp.allclose(out, ref, atol=1e-4, rtol=1e-4), "case 1 mismatch"

    # Case 2: exercise the HW-tiled fallback (forced tiny block-byte target).
    N2, C2, H2, W2 = 2, 8, 16, 16
    half2 = 4
    k2 = jax.random.split(key, 6)
    x2 = jax.random.normal(k2[0], (N2, C2, H2, W2), dtype=jnp.float32)
    in_w2 = 1.0 + 0.1 * jax.random.normal(k2[1], (half2,), dtype=jnp.float32)
    in_b2 = 0.1 * jax.random.normal(k2[2], (half2,), dtype=jnp.float32)
    bn_w2 = 1.0 + 0.1 * jax.random.normal(k2[3], (C2 - half2,), dtype=jnp.float32)
    bn_b2 = 0.1 * jax.random.normal(k2[4], (C2 - half2,), dtype=jnp.float32)

    out2 = jax.block_until_ready(
        dubin_forward(x2, in_w2, in_b2, bn_w2, bn_b2, half=half2,
                      block_target_bytes=4096))
    ref2 = dubin_reference(x2, in_w2, in_b2, bn_w2, bn_b2, half=half2)
    assert out2.shape == (N2, C2, H2, W2)
    assert jnp.allclose(out2, ref2, atol=1e-4, rtol=1e-4), "case 2 mismatch"

    print("KERNEL_OK")
</pallas_src>

<mosaic_0001>
module attributes {stable_mosaic.version = 11 : i64} {
  func.func @_bn_stats_kernel(%arg0: i32, %arg1: i32, %arg2: memref<1x4x256xf32, #tpu.memory_space<vmem>>, %arg3: memref<4x1xf32, #tpu.memory_space<vmem>>, %arg4: memref<4x1xf32, #tpu.memory_space<vmem>>) attributes {dimension_semantics = [#tpu.dimension_semantics<parallel>, #tpu.dimension_semantics<arbitrary>], iteration_bounds = array<i64: 1, 2>, scalar_prefetch = 0 : i64, scratch_operands = 0 : i64, tpu.core_type = #tpu.core_type<tc>, window_params = [{transform_indices = @transform_0, window_bounds = array<i64: 1, 4, 256>}, {transform_indices = @transform_1, window_bounds = array<i64: 4, 1>}, {transform_indices = @transform_2, window_bounds = array<i64: 4, 1>}]} {
    %c0 = arith.constant 0 : index
    %c0_0 = arith.constant 0 : index
    %c0_1 = arith.constant 0 : index
    %0 = vector.load %arg2[%c0, %c0_0, %c0_1] : memref<1x4x256xf32, #tpu.memory_space<vmem>>, vector<1x4x256xf32>
    %1 = vector.shape_cast %0 : vector<1x4x256xf32> to vector<4x256xf32>
    %c4_i32 = arith.constant 4 : i32
    %2 = arith.muli %arg0, %c4_i32 : i32
    %c0_i32 = arith.constant 0 : i32
    %3 = arith.addi %c0_i32, %2 : i32
    %4 = tpu.iota {dimensions = array<i32: 0>} : vector<4x1xi32>
    %5 = vector.broadcast %3 : i32 to vector<4x1xi32>
    %6 = arith.addi %5, %4 : vector<4x1xi32>
    %c2_i32 = arith.constant 2 : i32
    %7 = vector.broadcast %c2_i32 : i32 to vector<4x1xi32>
    %8 = arith.cmpi sge, %6, %7 : vector<4x1xi32>
    %cst = arith.constant 0.000000e+00 : f32
    %9 = vector.shape_cast %8 : vector<4x1xi1> to vector<4x1xi1>
    %10 = vector.broadcast %9 : vector<4x1xi1> to vector<4x256xi1>
    %11 = vector.broadcast %cst : f32 to vector<4x256xf32>
    %12 = arith.select %10, %1, %11 : vector<4x256xi1>, vector<4x256xf32>
    %cst_2 = arith.constant dense<0.000000e+00> : vector<4xf32>
    %13 = vector.multi_reduction <add>, %12, %cst_2 [1] : vector<4x256xf32> to vector<4xf32>
    %14 = vector.shape_cast %13 : vector<4xf32> to vector<4x1xf32>
    %15 = arith.mulf %12, %12 : vector<4x256xf32>
    %cst_3 = arith.constant dense<0.000000e+00> : vector<4xf32>
    %16 = vector.multi_reduction <add>, %15, %cst_3 [1] : vector<4x256xf32> to vector<4xf32>
    %17 = vector.shape_cast %16 : vector<4xf32> to vector<4x1xf32>
    %c0_i32_4 = arith.constant 0 : i32
    %18 = arith.cmpi eq, %arg1, %c0_i32_4 : i32
    %19 = arith.extui %18 : i1 to i32
    %c0_i32_5 = arith.constant 0 : i32
    %20 = arith.cmpi ne, %19, %c0_i32_5 : i32
    scf.if %20 {
      %c0_8 = arith.constant 0 : index
      %c0_9 = arith.constant 0 : index
      %24 = vector.load %arg3[%c0_8, %c0_9] : memref<4x1xf32, #tpu.memory_space<vmem>>, vector<4x1xf32>
      tpu.vector_store %arg3[%c0_8, %c0_9], %14 {strides = array<i32>} : memref<4x1xf32, #tpu.memory_space<vmem>>, vector<4x1xf32>,
      %c0_10 = arith.constant 0 : index
      %c0_11 = arith.constant 0 : index
      %25 = vector.load %arg4[%c0_10, %c0_11] : memref<4x1xf32, #tpu.memory_space<vmem>>, vector<4x1xf32>
      tpu.vector_store %arg4[%c0_10, %c0_11], %17 {strides = array<i32>} : memref<4x1xf32, #tpu.memory_space<vmem>>, vector<4x1xf32>,
    } else {
    }
    %c0_i32_6 = arith.constant 0 : i32
    %21 = arith.cmpi sgt, %arg1, %c0_i32_6 : i32
    %22 = arith.extui %21 : i1 to i32
    %c0_i32_7 = arith.constant 0 : i32
    %23 = arith.cmpi ne, %22, %c0_i32_7 : i32
    scf.if %23 {
      %c0_8 = arith.constant 0 : index
      %c0_9 = arith.constant 0 : index
      %24 = vector.load %arg3[%c0_8, %c0_9] : memref<4x1xf32, #tpu.memory_space<vmem>>, vector<4x1xf32>
      %25 = arith.addf %24, %14 : vector<4x1xf32>
      %c0_10 = arith.constant 0 : index
      %c0_11 = arith.constant 0 : index
      %26 = vector.load %arg3[%c0_10, %c0_11] : memref<4x1xf32, #tpu.memory_space<vmem>>, vector<4x1xf32>
      tpu.vector_store %arg3[%c0_10, %c0_11], %25 {strides = array<i32>} : memref<4x1xf32, #tpu.memory_space<vmem>>, vector<4x1xf32>,
      %c0_12 = arith.constant 0 : index
      %c0_13 = arith.constant 0 : index
      %27 = vector.load %arg4[%c0_12, %c0_13] : memref<4x1xf32, #tpu.memory_space<vmem>>, vector<4x1xf32>
      %28 = arith.addf %27, %17 : vector<4x1xf32>
      %c0_14 = arith.constant 0 : index
      %c0_15 = arith.constant 0 : index
      %29 = vector.load %arg4[%c0_14, %c0_15] : memref<4x1xf32, #tpu.memory_space<vmem>>, vector<4x1xf32>
      tpu.vector_store %arg4[%c0_14, %c0_15], %28 {strides = array<i32>} : memref<4x1xf32, #tpu.memory_space<vmem>>, vector<4x1xf32>,
    } else {
    }
    return
  }
  func.func @transform_0(%arg0: i32, %arg1: i32) -> (i32, i32, i32) {
    %c0_i32 = arith.constant 0 : i32
    %0 = arith.addi %c0_i32, %arg0 : i32
    %c0_i32_0 = arith.constant 0 : i32
    %c0_i32_1 = arith.constant 0 : i32
    return %arg1, %0, %c0_i32_0 : i32, i32, i32
  }
  func.func @transform_1(%arg0: i32, %arg1: i32) -> (i32, i32) {
    %c0_i32 = arith.constant 0 : i32
    %c0_i32_0 = arith.constant 0 : i32
    return %arg0, %c0_i32 : i32, i32
  }
  func.func @transform_2(%arg0: i32, %arg1: i32) -> (i32, i32) {
    %c0_i32 = arith.constant 0 : i32
    %c0_i32_0 = arith.constant 0 : i32
    return %arg0, %c0_i32 : i32, i32
  }
}

</mosaic_0001>

<llo_original>
// kernel: tpu_custom_call.1
$region0: #{tpu_custom_call.1}
  #allocation0 [shape = 'u32[]', space=smem, size = 0x4, offset = 0x4, fixed_abs, tag = 'smem constant byte address 0x4 - core index']
  #allocation1 [shape = 'u32[72,128]{1,0:T(1,128)}', space=vmem, size = 0x9000, scoped, tag = 'internal scratch']
  %s0 = inlined_call_operand.hbm [shape: f32[2,4,256], index: 0, kind: input, shape index: {}]
  %s1 = inlined_call_operand.vmem [shape: f32[4,1], index: 1, kind: output, shape index: {0}]
  %s2 = inlined_call_operand.vmem [shape: f32[4,1], index: 2, kind: output, shape index: {1}]
  %3 = xla_tuple %s1, %s2
  %s4 = sld [smem:[#allocation0]]
  $region57: #{tpu_custom_call.1} parent=0
    _
  %s6 = ssub.s32 1, %s4
  %s7 = scalar_select 0, %s6, %s4
  $region1: #{tpu_custom_call.1} parent=0
    #allocation2 [shape = 'u8[8192]{0}', space=vmem, size = 0x2000, scoped, tag = 'input window, operand 0']
    #allocation3 [shape = 's32[2]{0}', space=sflag, size = 0x8, scoped, tag = 'scoped memory for tpu_custom_call.1']
    %8 = vsyncpa [#allocation3], 0
    %s9 = scalar_lea.sflag [#allocation3], 1
    %10 = vsyncpa %s9, 0
    loop: start=0, step=1, limit=4
    $region2: #{tpu_custom_call.1} parent=1 // loop_pre_header
      _
    $region3: #{tpu_custom_call.1} parent=1 // loop_header
      %s12 = sphi 0, %s16
      %p13 = scmp.ge.s32.totalorder %s12, 4
      %s19 = sphi 0, %s31
      %s20 = sphi 0, %s27
      %s21 = sphi 0, %s19
      %s22 = sphi 0, %s20
      %s23 = sphi 0, %s21
      %s24 = sphi 0, %s22
      %s36 = sphi 0, %s38
      %s39 = sphi 0, %s36
      %s40 = sphi 0, %s39
      %s56 = sphi 0, %s40
      %s62 = sphi 0, %s64
      %s65 = sphi 0, %s62
      %s66 = sphi 0, %s65
      %s82 = sphi 0, %s66
      %s88 = sphi 0, %s90
      %s91 = sphi 0, %s88
      %s92 = sphi 0, %s91
      %s108 = sphi 0, %s92
    $region4: #{tpu_custom_call.1} parent=1 // loop_header_branch
      %15 = sbr.rel (%p13) target = $region8
    $region5: #{tpu_custom_call.1} parent=1 // loop_body
      %s17 = ssub.s32 %s12, 1
      %s18 = ssub.s32 %s12, 2
      %s25 = sadd.s32 1, %s20
      %p26 = scmp.ge.s32.totalorder %s25, 2
      %s27 = scalar_select %p26, 0, %s25
      %s28 = sadd.s32 1, %s19
      %s29 = scalar_select %p26, %s28, %s19
      %p30 = scmp.ge.s32.totalorder %s29, 1
      %s31 = scalar_select %p30, 0, %s29
      %s32 = ssub.s32 %s20, %s27
      %s33 = ssub.s32 %s19, %s31
      %s34 = sor.u32 %s32, %s33
      %p35 = scmp.eq.s32.totalorder %s34, 0
      %s37 = sadd.s32 %s36, 1
      %s38 = scalar_select %p35, %s36, %s37
      %p41 = pneg %p35
      %p42 = scmp.eq.s32.totalorder %s12, 1
      %p43 = por %p41, %p42
      %p44 = scmp.ne.s32.totalorder %s36, %s39
      %p45 = scmp.eq.s32.totalorder %s12, 0
      %p46 = por %p44, %p45
      %p47 = scmp.ne.s32.totalorder %s36, %s39
      %p48 = scmp.eq.s32.totalorder %s17, 1
      %p49 = por %p47, %p48
      %p50 = scmp.ne.s32.totalorder %s39, %s40
      %p51 = scmp.eq.s32.totalorder %s17, 0
      %p52 = por %p50, %p51
      %p53 = scmp.ne.s32.totalorder %s39, %s40
      %p54 = scmp.eq.s32.totalorder %s18, 1
      %p55 = por %p53, %p54
      %p57 = scmp.ne.s32.totalorder %s40, %s56
      %p58 = scmp.eq.s32.totalorder %s18, 0
      %p59 = por %p57, %p58
      %s60 = ssub.s32 %s19, %s31
      %p61 = scmp.eq.s32.totalorder %s60, 0
      %s63 = sadd.s32 %s62, 1
      %s64 = scalar_select %p61, %s62, %s63
      %p67 = pneg %p61
      %p68 = scmp.eq.s32.totalorder %s12, 1
      %p69 = por %p67, %p68
      %p70 = scmp.ne.s32.totalorder %s62, %s65
      %p71 = scmp.eq.s32.totalorder %s12, 0
      %p72 = por %p70, %p71
      %p73 = scmp.ne.s32.totalorder %s62, %s65
      %p74 = scmp.eq.s32.totalorder %s17, 1
      %p75 = por %p73, %p74
      %p76 = scmp.ne.s32.totalorder %s65, %s66
      %p77 = scmp.eq.s32.totalorder %s17, 0
      %p78 = por %p76, %p77
      %p79 = scmp.ne.s32.totalorder %s65, %s66
      %p80 = scmp.eq.s32.totalorder %s18, 1
      %p81 = por %p79, %p80
      %p83 = scmp.ne.s32.totalorder %s66, %s82
      %p84 = scmp.eq.s32.totalorder %s18, 0
      %p85 = por %p83, %p84
      %s86 = ssub.s32 %s19, %s31
      %p87 = scmp.eq.s32.totalorder %s86, 0
      %s89 = sadd.s32 %s88, 1
      %s90 = scalar_select %p87, %s88, %s89
      %p93 = pneg %p87
      %p94 = scmp.eq.s32.totalorder %s12, 1
      %p95 = por %p93, %p94
      %p96 = scmp.ne.s32.totalorder %s88, %s91
      %p97 = scmp.eq.s32.totalorder %s12, 0
      %p98 = por %p96, %p97
      %p99 = scmp.ne.s32.totalorder %s88, %s91
      %p100 = scmp.eq.s32.totalorder %s17, 1
      %p101 = por %p99, %p100
      %p102 = scmp.ne.s32.totalorder %s91, %s92
      %p103 = scmp.eq.s32.totalorder %s17, 0
      %p104 = por %p102, %p103
      %p105 = scmp.ne.s32.totalorder %s91, %s92
      %p106 = scmp.eq.s32.totalorder %s18, 1
      %p107 = por %p105, %p106
      %p109 = scmp.ne.s32.totalorder %s92, %s108
      %p110 = scmp.eq.s32.totalorder %s18, 0
      %p111 = por %p109, %p110
      %p112 = scmp.le.s32.totalorder 1, %s12
      %p113 = scmp.lt.s32.totalorder %s12, 3
      %p114 = pnand %p112, %p113
      %p115 = pneg %p114
      // Predicated region
      $region9: #{tpu_custom_call.1} parent=5 // pred_check
        _
      $region10: #{tpu_custom_call.1} parent=5 // pred_check_branch
        %117 = sbr.rel (%p114) target = $region12
      $region11: #{tpu_custom_call.1} parent=5 // pred_region
        %s118 = ssub.s32 %s12, 1
      $region12: #{tpu_custom_call.1} parent=5 // pred_fallthru
        _
      %p119 = scmp.lt.s32.totalorder %s12, 2
      // Predicated region
      $region13: #{tpu_custom_call.1} parent=5 // pred_check
        %p120 = pneg %p119
      $region14: #{tpu_custom_call.1} parent=5 // pred_check_branch
        %122 = sbr.rel (%p120) target = $region16
      $region15: #{tpu_custom_call.1} parent=5 // pred_region
        // Predicated region
        $region17: #{tpu_custom_call.1} parent=15 // pred_check
          %p123 = pneg %p46
        $region18: #{tpu_custom_call.1} parent=15 // pred_check_branch
          %125 = sbr.rel (%p123) target = $region20
        $region19: #{tpu_custom_call.1} parent=15 // pred_region
          %s126 = sand.u32 %s36, 1
          %s127 = scalar_lea.sflag [#allocation3], %s126
          %s128 = sand.u32 %s36, 1
          %s129 = smul.addr %s128, 8
          %s130 = scalar_lea.vmem [#allocation2], %s129
          %132 = vsyncadd %s127, 0
          %s133 = smul.addr %s19, 2
          %s134 = smul.addr %s20, 2
          %s135 = sadd.s32 %s133, %s134
          %s136 = smul.addr %s135, 4
          %s137 = scalar_lea.hbm %s0, %s136
          %s139 = sshll.u32 %s137, 4
          %s140 = int_to_ptr.hbm [resolvable:$true] %s139
          %s141 = sshll.u32 %s130, 4
          %s142 = int_to_ptr.vmem [resolvable:$true] %s141
          %144 = dma.hbm_to_vmem [thread:$0]  %s140, 128, %s142, %s127
        $region20: #{tpu_custom_call.1} parent=15 // pred_fallthru
          _
      $region16: #{tpu_custom_call.1} parent=5 // pred_fallthru
        _
      %p145 = scmp.le.s32.totalorder 1, %s12
      %p146 = scmp.lt.s32.totalorder %s12, 3
      %p147 = pnand %p145, %p146
      %p148 = pneg %p147
      // Predicated region
      $region21: #{tpu_custom_call.1} parent=5 // pred_check
        _
      $region22: #{tpu_custom_call.1} parent=5 // pred_check_branch
        %150 = sbr.rel (%p147) target = $region24
      $region23: #{tpu_custom_call.1} parent=5 // pred_region
        %s151 = ssub.s32 %s12, 1
        %s152 = sand.u32 %s39, 1
        %s153 = scalar_lea.sflag [#allocation3], %s152
        %s154 = sand.u32 %s39, 1
        %s155 = smul.addr %s154, 8
        %s156 = scalar_lea.vmem [#allocation2], %s155
        // Predicated region
        $region25: #{tpu_custom_call.1} parent=23 // pred_check
          %p157 = pneg %p52
        $region26: #{tpu_custom_call.1} parent=23 // pred_check_branch
          %159 = sbr.rel (%p157) target = $region28
        $region27: #{tpu_custom_call.1} parent=23 // pred_region
          %161 = dma.done %s153, 128
        $region28: #{tpu_custom_call.1} parent=23 // pred_fallthru
          _
        %s162 = sand.u32 %s39, 1
        %s163 = scalar_lea.sflag [#allocation3], %s162
        %s164 = sand.u32 %s39, 1
        %s165 = smul.addr %s164, 8
        %s166 = scalar_lea.vmem [#allocation2], %s165
        %p167 = pneg %p52
        %p168 = pneg %p49
        %p169 = pneg %p78
        %p170 = pneg %p75
        %p171 = scmp.lt.s32.totalorder %s21, 0
        %s172 = scalar_select %p171, %s21, 0
        %s173 = smul.addr %s172, 4
        %s174 = scalar_lea.vmem %s1, %s173
        %p175 = pneg %p104
        %p176 = pneg %p101
        %p177 = scmp.lt.s32.totalorder %s21, 0
        %s178 = scalar_select %p177, %s21, 0
        %s179 = smul.addr %s178, 4
        %s180 = scalar_lea.vmem %s2, %s179
        %p181 = scmp.lt.s32.totalorder %s21, 0
        %s182 = scalar_select %p181, %s21, 0
        %s183 = smul.addr %s182, 4
        %s184 = scalar_lea.vmem %s1, %s183
        %p185 = scmp.lt.s32.totalorder %s21, 0
        %s186 = scalar_select %p185, %s21, 0
        %s187 = smul.addr %s186, 4
        %s188 = scalar_lea.vmem %s2, %s187
        %v189 = vld [vmem:[%s156] sm:$0xff]
        %s190 = smul.u32 %s21, 4
        %v191 = vlaneseq
        %v192 = vshrl.u32 %v191, 7
        %v193 = vstv %s190
        %v194 = vadd.s32 %v193, %v192
        %vm195 = vcmp.ge.s32.totalorder %v194, 2
        %v196 = vsel %vm195, 1, 0
        %vm197 = vcmp.eq.s32.totalorder %v196, 1
        %199 = vst [vmem:[#allocation1] ss:$2 sm:$0xff] %v189
        %v200 = vld.sshfl [vmem:[#allocation1] sm:$0xff pattern:$0x75316420]
        %v201 = vld.sshfl [vmem:[#allocation1 + $0x8] sm:$0xff pattern:$0x75316420]
        %v204 = vsel %vm197, %v200, 0.0
        %v205 = vsel %vm197, %v201, 0.0
        %vm206 = vcmask 1043456
        %v207 = vsel %vm206, %v204, 0.0
        %v208 = vsel %vm206, %v205, 0.0
        %v209 = vadd.f32 %v207, %v208
        %210 = vadd.xlane.f32.xlu0 %v209
        %v211 = vpop.xlane.xlu0 %210
        %v212 = vmul.f32 %v204, %v204
        %v213 = vmul.f32 %v205, %v205
        %v214 = vsel %vm206, %v212, 0.0
        %v215 = vsel %vm206, %v213, 0.0
        %v216 = vadd.f32 %v214, %v215
        %217 = vadd.xlane.f32.xlu0 %v216
        %v218 = vpop.xlane.xlu0 %217
        %p219 = scmp.eq.s32.totalorder %s22, 0
        // Predicated region
        $region29: #{tpu_custom_call.1} parent=23 // pred_check
          %p220 = pneg %p219
        $region30: #{tpu_custom_call.1} parent=23 // pred_check_branch
          %222 = sbr.rel (%p220) target = $region32
        $region31: #{tpu_custom_call.1} parent=23 // pred_region
          %vm223 = vcmask 3072
          %224 = vst.msk [vmem:[%s184] sm:$0xf] %vm223, %v211
          %225 = vst.msk [vmem:[%s188] sm:$0xf] %vm223, %v218
        $region32: #{tpu_custom_call.1} parent=23 // pred_fallthru
          _
        %p226 = scmp.gt.s32.totalorder %s22, 0
        // Predicated region
        $region33: #{tpu_custom_call.1} parent=23 // pred_check
          %p227 = pneg %p226
        $region34: #{tpu_custom_call.1} parent=23 // pred_check_branch
          %229 = sbr.rel (%p227) target = $region36
        $region35: #{tpu_custom_call.1} parent=23 // pred_region
          %v230 = vld [vmem:[%s184] sm:$0xf]
          %v231 = vadd.f32 %v230, %v211
          %vm232 = vcmask 3072
          %233 = vst.msk [vmem:[%s184] sm:$0xf] %vm232, %v231
          %v234 = vld [vmem:[%s188] sm:$0xf]
          %v235 = vadd.f32 %v234, %v218
          %236 = vst.msk [vmem:[%s188] sm:$0xf] %vm232, %v235
        $region36: #{tpu_custom_call.1} parent=23 // pred_fallthru
          _
        %p237 = scmp.lt.s32.totalorder %s21, 0
        %s238 = scalar_select %p237, %s21, 0
        %s239 = smul.addr %s238, 4
        %s240 = scalar_lea.vmem %s1, %s239
        %p241 = scmp.lt.s32.totalorder %s21, 0
        %s242 = scalar_select %p241, %s21, 0
        %s243 = smul.addr %s242, 4
        %s244 = scalar_lea.vmem %s2, %s243
        // Predicated region
        $region37: #{tpu_custom_call.1} parent=23 // pred_check
          %p245 = pneg %p75
        $region38: #{tpu_custom_call.1} parent=23 // pred_check_branch
          %247 = sbr.rel (%p245) target = $region40
        $region39: #{tpu_custom_call.1} parent=23 // pred_region
          _
        $region40: #{tpu_custom_call.1} parent=23 // pred_fallthru
          _
        // Predicated region
        $region41: #{tpu_custom_call.1} parent=23 // pred_check
          %p248 = pneg %p101
        $region42: #{tpu_custom_call.1} parent=23 // pred_check_branch
          %250 = sbr.rel (%p248) target = $region44
        $region43: #{tpu_custom_call.1} parent=23 // pred_region
          _
        $region44: #{tpu_custom_call.1} parent=23 // pred_fallthru
          _
        // Predicated region
        $region45: #{tpu_custom_call.1} parent=23 // pred_check
          %p251 = pneg %p75
        $region46: #{tpu_custom_call.1} parent=23 // pred_check_branch
          %253 = sbr.rel (%p251) target = $region48
        $region47: #{tpu_custom_call.1} parent=23 // pred_region
          %p254 = scmp.lt.s32.totalorder %s21, 0
          %s255 = scalar_select %p254, %s21, 0
          %s256 = smul.addr %s255, 4
          %s257 = scalar_lea.vmem %s1, %s256
        $region48: #{tpu_custom_call.1} parent=23 // pred_fallthru
          _
        // Predicated region
        $region49: #{tpu_custom_call.1} parent=23 // pred_check
          %p258 = pneg %p101
        $region50: #{tpu_custom_call.1} parent=23 // pred_check_branch
          %260 = sbr.rel (%p258) target = $region52
        $region51: #{tpu_custom_call.1} parent=23 // pred_region
          %p261 = scmp.lt.s32.totalorder %s21, 0
          %s262 = scalar_select %p261, %s21, 0
          %s263 = smul.addr %s262, 4
          %s264 = scalar_lea.vmem %s2, %s263
        $region52: #{tpu_custom_call.1} parent=23 // pred_fallthru
          _
      $region24: #{tpu_custom_call.1} parent=5 // pred_fallthru
        _
      %p265 = scmp.le.s32.totalorder 2, %s12
      // Predicated region
      $region53: #{tpu_custom_call.1} parent=5 // pred_check
        %p266 = pneg %p265
      $region54: #{tpu_custom_call.1} parent=5 // pred_check_branch
        %268 = sbr.rel (%p266) target = $region56
      $region55: #{tpu_custom_call.1} parent=5 // pred_region
        %s269 = ssub.s32 %s12, 2
      $region56: #{tpu_custom_call.1} parent=5 // pred_fallthru
        _
    $region6: #{tpu_custom_call.1} parent=1 // loop_footer
      %s16 = sadd.s32 1, %s12
    $region7: #{tpu_custom_call.1} parent=1 // loop_footer_branch
      %11 = sbr.rel target = $region3
    $region8: #{tpu_custom_call.1} parent=1 // loop_exit
      _
    %270 = vsyncpa [#allocation3], 1
    %s271 = scalar_lea.sflag [#allocation3], 1
    %272 = vsyncpa %s271, 1

</llo_original>
